<compile_context>
chip_gen: v6e
topology: v6e:2x2x1
jax: 0.10.0
libtpu: 0.0.40
codegen_flags: <defaults>
</compile_context>

<pallas_src>
import functools
import math

import jax
import jax.numpy as jnp
from jax import lax
from jax.experimental import pallas as pl
from jax.experimental.pallas import tpu as pltpu


_LANE = 128


def _cdiv(a, b):
    return -(-a // b)


def _round_up(a, b):
    return _cdiv(a, b) * b


def _ipow(x, n):
    """x ** n for static int n >= 1 via exponentiation-by-squaring (VALU only)."""
    result = None
    base = x
    n = int(n)
    while n > 0:
        if n & 1:
            result = base if result is None else result * base
        n >>= 1
        if n:
            base = base * base
    return result


def _gem_kernel(p_ref, x_ref, o_ref, acc_ref, *, eps, hw, tile_hw, p_static, mask_hw):
    # p_ref:   (1,) f32 SMEM         learnable GeM exponent (unused on static path)
    # x_ref:   (tile_bc, tile_hw)    VMEM input block
    # o_ref:   (tile_bc, 1)          VMEM output block, resident across the k axis
    # acc_ref: (tile_bc, 128) f32    VMEM lane-dense partial-sum accumulator
    k = pl.program_id(1)

    @pl.when(k == 0)
    def _init():
        acc_ref[...] = jnp.zeros_like(acc_ref)

    if p_static is None:
        p_val = p_ref[0]  # hoist the SMEM scalar read out of the chunk loop

    n_chunks = tile_hw // _LANE
    base = k * tile_hw
    part = None
    for c in range(n_chunks):
        # Per-chunk load keeps VMEM temp pressure low; slices are lane-aligned.
        xc = jnp.maximum(
            x_ref[:, c * _LANE:(c + 1) * _LANE].astype(jnp.float32), eps
        )
        if p_static is not None:
            xpc = _ipow(xc, p_static)                # VPU multiplies, no EUP
        else:
            xpc = jnp.exp(p_val * jnp.log(xc))       # learnable p: exp(p*log x)
        if mask_hw:
            # Mask the *post-power* values so the padded tail contributes 0
            # (masking x would get clamped up to eps and bias the mean).
            col = lax.broadcasted_iota(jnp.int32, xpc.shape, 1)
            xpc = jnp.where(base + c * _LANE + col < hw, xpc, 0.0)
        part = xpc if part is None else part + xpc
    acc_ref[...] += part                             # one unmasked RMW per step

    @pl.when(k == pl.num_programs(1) - 1)
    def _finalize():
        if p_static is not None:
            inv_p = jnp.float32(1.0 / float(p_static))
        else:
            inv_p = 1.0 / p_ref[0]
        total = jnp.sum(acc_ref[...], axis=-1, keepdims=True)   # single XLU reduce
        # mean ** (1/p) == exp((log(sum) - log(HW)) * (1/p)); epilogue
        # transcendentals touch only tile_bc values, not the per-element path.
        log_hw = jnp.float32(math.log(hw))
        o_ref[...] = jnp.exp((jnp.log(total) - log_hw) * inv_p).astype(o_ref.dtype)


def _choose_tiles(bc, hw, itemsize):
    """Byte-targeted (~4 MiB) block sizing, (sublane, lane)-aligned, with a
    >= 2-block (preferably even) parallel axis so both v7x TCs get work."""
    sub = 16 if itemsize == 2 else 8
    target_bytes = 4 << 20          # sweet spot for HBM pipelining efficiency
    max_tile_hw = 8192              # lanes cap; keeps per-row footprint sane

    tile_hw = min(_round_up(hw, _LANE), max_tile_hw)

    rows = max(sub, (target_bytes // (tile_hw * itemsize)) // sub * sub)
    tile_bc = min(rows, _round_up(bc, sub))
    if tile_bc >= bc:
        tile_bc = bc                # full-dim block is always layout-legal

    grid_bc = _cdiv(bc, tile_bc)
    if bc > sub:
        want = grid_bc
        if grid_bc == 1:
            want = 2                # both TensorCores get work (v7x megacore)
        elif grid_bc % 2 == 1:
            want = grid_bc + 1      # balanced split across 2 TCs
        if want != grid_bc:
            cand = max(sub, _round_up(_cdiv(bc, want), sub))
            # Accept the split unless it would shrink blocks below ~1 MiB
            # (except when the alternative is leaving one TC idle).
            if grid_bc == 1 or cand * tile_hw * itemsize >= (1 << 20):
                tile_bc = cand
    return tile_bc, tile_hw


def gem_pallas(x, p, eps=1e-6, p_static="auto"):
    """GeM pooling.  x: (B, C, H, W), p: (1,) f32.  Returns (B, C, 1, 1) in x.dtype.

    p_static:
      "auto" (default): if p is a concrete integer-valued array (e.g. the
        module default p=3), use the VPU multiply fast path; otherwise the
        traced exp/log path.
      int:  force a static exponent.
      None: force the traced (learnable-p) exp/log path.
    """
    B, C, H, W = x.shape
    bc, hw = B * C, H * W
    xf = x.reshape(bc, hw)                       # free reshape of contiguous NCHW
    p_arr = jnp.asarray(p, jnp.float32).reshape(1)

    if isinstance(p_static, str) and p_static == "auto":
        p_static = None
        try:                                     # concrete integer p -> VPU path
            pv = float(jax.device_get(p_arr)[0])
            if abs(pv - round(pv)) < 1e-6 and 1 <= round(pv) <= 64:
                p_static = int(round(pv))
        except Exception:                        # traced (e.g. under jit) -> exp/log
            p_static = None

    itemsize = jnp.dtype(x.dtype).itemsize
    tile_bc, tile_hw = _choose_tiles(bc, hw, itemsize)
    grid = (_cdiv(bc, tile_bc), _cdiv(hw, tile_hw))
    mask_hw = (hw % tile_hw) != 0

    block_bytes = tile_bc * tile_hw * itemsize
    n_buf = 2
    x_index = lambda i, k: (i, k)
    x_spec = None
    if block_bytes < (1 << 20) and grid[0] * grid[1] >= 4:
        # Small blocks: deepen the input pipeline to hide per-step DMA latency.
        try:
            x_spec = pl.BlockSpec((tile_bc, tile_hw), x_index,
                                  pipeline_mode=pl.Buffered(3))
            n_buf = 3
        except Exception:
            x_spec = None
    if x_spec is None:
        x_spec = pl.BlockSpec((tile_bc, tile_hw), x_index)

    if p_static is not None:
        flops = (2 + max(1, int(p_static).bit_length())) * bc * hw
        transcendentals = 2 * bc
    else:
        flops = 3 * bc * hw
        transcendentals = 2 * bc * hw + 2 * bc
    bytes_accessed = itemsize * bc * hw + itemsize * bc

    acc_bytes = tile_bc * _LANE * 4
    vmem_limit = int(min(56 << 20,
                         max(32 << 20, n_buf * block_bytes + acc_bytes + (8 << 20))))

    out = pl.pallas_call(
        functools.partial(_gem_kernel, eps=float(eps), hw=hw, tile_hw=tile_hw,
                          p_static=p_static, mask_hw=mask_hw),
        out_shape=jax.ShapeDtypeStruct((bc, 1), x.dtype),
        grid=grid,
        in_specs=[
            pl.BlockSpec(memory_space=pltpu.MemorySpace.SMEM),   # p (scalar)
            x_spec,                                              # x block
        ],
        out_specs=pl.BlockSpec((tile_bc, 1), lambda i, k: (i, 0)),
        scratch_shapes=[pltpu.VMEM((tile_bc, _LANE), jnp.float32)],
        compiler_params=pltpu.CompilerParams(
            dimension_semantics=("parallel", "arbitrary"),
            vmem_limit_bytes=vmem_limit,
        ),
        cost_estimate=pl.CostEstimate(
            flops=int(flops),
            transcendentals=int(transcendentals),
            bytes_accessed=int(bytes_accessed),
        ),
    )(p_arr, xf)

    return out.reshape(B, C, 1, 1)


def gem_reference(x, p, eps=1e-6):
    xc = jnp.maximum(x, eps)
    m = jnp.mean(xc ** p[0], axis=(-2, -1), keepdims=True)
    return m ** (1.0 / p[0])


if __name__ == "__main__":
    eps = 1e-6
    # GeM.__init__(p=3): p = ones(1) * 3 (learnable parameter)
    p = jnp.ones((1,), dtype=jnp.float32) * 3.0
    key = jax.random.PRNGKey(0)
    k0, k1, k2, k3 = jax.random.split(key, 4)

    # 1) module-default small shape (auto -> static-p VPU fast path)
    x = jax.random.normal(k0, (2, 4, 16, 16), dtype=jnp.float32)
    y = gem_pallas(x, p, eps)
    jax.block_until_ready(y)
    y_ref = gem_reference(x, p, eps)
    assert y.shape == (2, 4, 1, 1)
    assert jnp.allclose(y, y_ref, rtol=1e-4, atol=1e-5), (
        f"static-p max abs diff {jnp.max(jnp.abs(y - y_ref))}")

    # 2) forced traced-p (learnable parameter) exp/log path on the same input
    y_t = gem_pallas(x, p, eps, p_static=None)
    jax.block_until_ready(y_t)
    assert jnp.allclose(y_t, y_ref, rtol=2e-4, atol=1e-5), (
        f"traced-p max abs diff {jnp.max(jnp.abs(y_t - y_ref))}")

    # 3) non-integer p -> auto dispatch falls back to the traced path
    p25 = jnp.ones((1,), jnp.float32) * 2.5
    y25 = gem_pallas(x, p25, eps)
    jax.block_until_ready(y25)
    y25_ref = gem_reference(x, p25, eps)
    assert jnp.allclose(y25, y25_ref, rtol=2e-4, atol=1e-5), (
        f"p=2.5 max abs diff {jnp.max(jnp.abs(y25 - y25_ref))}")

    # 4) ragged spatial dim (hw=10000: multi-step reduction + lane mask) with an
    #    even >=2-block parallel axis (bc=528 -> 6 x 88-row blocks)
    x2 = jax.random.normal(k1, (2, 264, 100, 100), dtype=jnp.float32)
    y2 = gem_pallas(x2, p, eps)
    jax.block_until_ready(y2)
    y2_ref = gem_reference(x2, p, eps)
    assert jnp.allclose(y2, y2_ref, rtol=2e-4, atol=1e-5), (
        f"ragged-hw max abs diff {jnp.max(jnp.abs(y2 - y2_ref))}")

    # 5) ragged row dim (bc=10 -> two 8-row blocks, last partial) and hw < 128
    x3 = jax.random.normal(k2, (2, 5, 10, 10), dtype=jnp.float32)
    y3 = gem_pallas(x3, p, eps)
    jax.block_until_ready(y3)
    y3_ref = gem_reference(x3, p, eps)
    assert jnp.allclose(y3, y3_ref, rtol=2e-4, atol=1e-5), (
        f"ragged-bc max abs diff {jnp.max(jnp.abs(y3 - y3_ref))}")

    # 6) bf16 input kept in bf16 through HBM (compute still f32 in-kernel)
    x4f = jax.random.normal(k3, (2, 8, 16, 16), dtype=jnp.float32)
    x4 = x4f.astype(jnp.bfloat16)
    y4 = gem_pallas(x4, p, eps)
    jax.block_until_ready(y4)
    y4_ref = gem_reference(x4.astype(jnp.float32), p, eps)
    assert y4.dtype == jnp.bfloat16
    assert jnp.allclose(y4.astype(jnp.float32), y4_ref, rtol=2e-2, atol=1e-3), (
        f"bf16 max abs diff {jnp.max(jnp.abs(y4.astype(jnp.float32) - y4_ref))}")

    print("KERNEL_OK")
</pallas_src>

<mosaic_0001>
module attributes {stable_mosaic.version = 11 : i64} {
  func.func @_gem_kernel(%arg0: i32, %arg1: i32, %arg2: memref<1xf32, #tpu.memory_space<smem>>, %arg3: memref<8x256xf32, #tpu.memory_space<vmem>>, %arg4: memref<8x1xf32, #tpu.memory_space<vmem>>, %arg5: memref<8x128xf32, #tpu.memory_space<vmem>>) attributes {dimension_semantics = [#tpu.dimension_semantics<parallel>, #tpu.dimension_semantics<arbitrary>], iteration_bounds = array<i64: 1, 1>, scalar_prefetch = 0 : i64, scratch_operands = 1 : i64, tpu.core_type = #tpu.core_type<tc>, window_params = [{transform_indices = @transform_0, window_bounds = array<i64: 1>}, {transform_indices = @transform_1, window_bounds = array<i64: 8, 256>}, {transform_indices = @transform_2, window_bounds = array<i64: 8, 1>}]} {
    %c0_i32 = arith.constant 0 : i32
    %0 = arith.cmpi eq, %arg1, %c0_i32 : i32
    %1 = arith.extui %0 : i1 to i32
    %c0_i32_0 = arith.constant 0 : i32
    %2 = arith.cmpi ne, %1, %c0_i32_0 : i32
    scf.if %2 {
      %cst_10 = arith.constant 0.000000e+00 : f32
      %20 = vector.broadcast %cst_10 : f32 to vector<8x128xf32>
      %c0_11 = arith.constant 0 : index
      %c0_12 = arith.constant 0 : index
      %21 = vector.load %arg5[%c0_11, %c0_12] : memref<8x128xf32, #tpu.memory_space<vmem>>, vector<8x128xf32>
      tpu.vector_store %arg5[%c0_11, %c0_12], %20 {strides = array<i32>} : memref<8x128xf32, #tpu.memory_space<vmem>>, vector<8x128xf32>,
    } else {
    }
    %c0 = arith.constant 0 : index
    %c0_1 = arith.constant 0 : index
    %3 = vector.load %arg3[%c0, %c0_1] : memref<8x256xf32, #tpu.memory_space<vmem>>, vector<8x128xf32>
    %cst = arith.constant 9.99999997E-7 : f32
    %4 = vector.broadcast %cst : f32 to vector<8x128xf32>
    %5 = arith.maximumf %3, %4 : vector<8x128xf32>
    %6 = arith.mulf %5, %5 : vector<8x128xf32>
    %7 = arith.mulf %5, %6 : vector<8x128xf32>
    %c0_2 = arith.constant 0 : index
    %c128 = arith.constant 128 : index
    %8 = vector.load %arg3[%c0_2, %c128] : memref<8x256xf32, #tpu.memory_space<vmem>>, vector<8x128xf32>
    %cst_3 = arith.constant 9.99999997E-7 : f32
    %9 = vector.broadcast %cst_3 : f32 to vector<8x128xf32>
    %10 = arith.maximumf %8, %9 : vector<8x128xf32>
    %11 = arith.mulf %10, %10 : vector<8x128xf32>
    %12 = arith.mulf %10, %11 : vector<8x128xf32>
    %13 = arith.addf %7, %12 : vector<8x128xf32>
    %c0_4 = arith.constant 0 : index
    %c0_5 = arith.constant 0 : index
    %14 = vector.load %arg5[%c0_4, %c0_5] : memref<8x128xf32, #tpu.memory_space<vmem>>, vector<8x128xf32>
    %15 = arith.addf %14, %13 : vector<8x128xf32>
    %c0_6 = arith.constant 0 : index
    %c0_7 = arith.constant 0 : index
    %16 = vector.load %arg5[%c0_6, %c0_7] : memref<8x128xf32, #tpu.memory_space<vmem>>, vector<8x128xf32>
    tpu.vector_store %arg5[%c0_6, %c0_7], %15 {strides = array<i32>} : memref<8x128xf32, #tpu.memory_space<vmem>>, vector<8x128xf32>,
    %c0_i32_8 = arith.constant 0 : i32
    %17 = arith.cmpi eq, %arg1, %c0_i32_8 : i32
    %18 = arith.extui %17 : i1 to i32
    %c0_i32_9 = arith.constant 0 : i32
    %19 = arith.cmpi ne, %18, %c0_i32_9 : i32
    scf.if %19 {
      %c0_10 = arith.constant 0 : index
      %c0_11 = arith.constant 0 : index
      %20 = vector.load %arg5[%c0_10, %c0_11] : memref<8x128xf32, #tpu.memory_space<vmem>>, vector<8x128xf32>
      %cst_12 = arith.constant dense<0.000000e+00> : vector<8xf32>
      %21 = vector.multi_reduction <add>, %20, %cst_12 [1] : vector<8x128xf32> to vector<8xf32>
      %22 = vector.shape_cast %21 : vector<8xf32> to vector<8x1xf32>
      %23 = math.log %22 : vector<8x1xf32>
      %cst_13 = arith.constant 5.54517746 : f32
      %24 = vector.broadcast %cst_13 : f32 to vector<8x1xf32>
      %25 = arith.subf %23, %24 : vector<8x1xf32>
      %cst_14 = arith.constant 0.333333343 : f32
      %26 = vector.broadcast %cst_14 : f32 to vector<8x1xf32>
      %27 = arith.mulf %25, %26 : vector<8x1xf32>
      %28 = math.exp %27 : vector<8x1xf32>
      %c0_15 = arith.constant 0 : index
      %c0_16 = arith.constant 0 : index
      %29 = vector.load %arg4[%c0_15, %c0_16] : memref<8x1xf32, #tpu.memory_space<vmem>>, vector<8x1xf32>
      tpu.vector_store %arg4[%c0_15, %c0_16], %28 {strides = array<i32>} : memref<8x1xf32, #tpu.memory_space<vmem>>, vector<8x1xf32>,
    } else {
    }
    return
  }
  func.func @transform_0(%arg0: i32, %arg1: i32) -> i32 {
    %c0_i32 = arith.constant 0 : i32
    %c0_i32_0 = arith.constant 0 : i32
    return %c0_i32 : i32
  }
  func.func @transform_1(%arg0: i32, %arg1: i32) -> (i32, i32) {
    %c0_i32 = arith.constant 0 : i32
    return %arg0, %arg1 : i32, i32
  }
  func.func @transform_2(%arg0: i32, %arg1: i32) -> (i32, i32) {
    %c0_i32 = arith.constant 0 : i32
    %c0_i32_0 = arith.constant 0 : i32
    return %arg0, %c0_i32 : i32, i32
  }
}

</mosaic_0001>

<llo_original>
// kernel: tpu_custom_call.1
$region0: #{tpu_custom_call.1}
  #allocation0 [shape = 'u32[]', space=smem, size = 0x4, offset = 0x4, fixed_abs, tag = 'smem constant byte address 0x4 - core index']
  #allocation1 [shape = 'u32[144,128]{1,0:T(1,128)}', space=vmem, size = 0x12000, scoped, tag = 'internal scratch']
  #allocation2 [shape = 'f32[8,128]{1,0:T(8,128)}', space=vmem, size = 0x1000, scoped, tag = 'scratch operand']
  #allocation3 [shape = 'f32[1]{0:T(128)S(6)}', space=smem, size = 0x200, scoped, tag = 'scoped memory for tpu_custom_call.1']
  %s0 = inlined_call_operand.<no memory space> [shape: f32[1], index: 0, kind: input, shape index: {}]
  %s1 = inlined_call_operand.hbm [shape: f32[8,256], index: 1, kind: input, shape index: {}]
  %s2 = inlined_call_operand.vmem [shape: f32[8,1], index: 2, kind: output, shape index: {}]
  %s3 = sld [smem:[#allocation0]]
  $region30: #{tpu_custom_call.1} parent=0
    _
  %s5 = ssub.s32 1, %s3
  %s6 = scalar_select 0, %s5, %s3
  %7 = sst [smem:[#allocation3]] %s0
  $region1: #{tpu_custom_call.1} parent=0
    #allocation4 [shape = 'u8[8192]{0}', space=vmem, size = 0x2000, scoped, tag = 'input window, operand 1, single buffered']
    #allocation5 [shape = 's32[1]{0}', space=sflag, size = 0x4, scoped, tag = 'scoped memory for tpu_custom_call.1']
    %8 = vsyncpa [#allocation5], 0
    // Predicated region
    $region2: #{tpu_custom_call.1} parent=1 // pred_check
      _
    $region3: #{tpu_custom_call.1} parent=1 // pred_check_branch
      %10 = sbr.rel (0) target = $region5
    $region4: #{tpu_custom_call.1} parent=1 // pred_region
      _
    $region5: #{tpu_custom_call.1} parent=1 // pred_fallthru
      _
    // Predicated region
    $region6: #{tpu_custom_call.1} parent=1 // pred_check
      _
    $region7: #{tpu_custom_call.1} parent=1 // pred_check_branch
      %12 = sbr.rel (0) target = $region9
    $region8: #{tpu_custom_call.1} parent=1 // pred_region
      %s14 = ssub.s32 256, 256
      %15 = vsyncadd [#allocation5], %s14
      %s17 = sshll.u32 [#allocation4], 4
      %s18 = int_to_ptr.vmem [resolvable:$true] %s17
      %20 = dma.hbm_to_vmem [thread:$0]  %s1, 256, %s18, [#allocation5]
    $region9: #{tpu_custom_call.1} parent=1 // pred_fallthru
      _
    // Predicated region
    $region10: #{tpu_custom_call.1} parent=1 // pred_check
      _
    $region11: #{tpu_custom_call.1} parent=1 // pred_check_branch
      %22 = sbr.rel (0) target = $region13
    $region12: #{tpu_custom_call.1} parent=1 // pred_region
      %23 = dma.done [#allocation5], 256
    $region13: #{tpu_custom_call.1} parent=1 // pred_fallthru
      _
    %p24 = scmp.eq.s32.totalorder 0, 0
    // Predicated region
    $region14: #{tpu_custom_call.1} parent=1 // pred_check
      %p25 = pneg %p24
    $region15: #{tpu_custom_call.1} parent=1 // pred_check_branch
      %27 = sbr.rel (%p25) target = $region17
    $region16: #{tpu_custom_call.1} parent=1 // pred_region
      %28 = vst [vmem:[#allocation2] sm:$0xff] 0.0
    $region17: #{tpu_custom_call.1} parent=1 // pred_fallthru
      _
    %v29 = vld [vmem:[#allocation4] sm:$0xff]
    %v30 = vmax.f32 %v29, 1e-06
    %v31 = vmul.f32 %v30, %v30
    %v32 = vmul.f32 %v30, %v31
    %v33 = vld [vmem:[#allocation4 + $0x8] sm:$0xff]
    %v34 = vmax.f32 %v33, 1e-06
    %v35 = vmul.f32 %v34, %v34
    %v36 = vmul.f32 %v34, %v35
    %v37 = vadd.f32 %v32, %v36
    %v38 = vld [vmem:[#allocation2] sm:$0xff]
    %v39 = vadd.f32 %v38, %v37
    %40 = vst [vmem:[#allocation2] sm:$0xff] %v39
    // Predicated region
    $region18: #{tpu_custom_call.1} parent=1 // pred_check
      %p41 = pneg %p24
    $region19: #{tpu_custom_call.1} parent=1 // pred_check_branch
      %43 = sbr.rel (%p41) target = $region21
    $region20: #{tpu_custom_call.1} parent=1 // pred_region
      %v44 = vld [vmem:[#allocation2] sm:$0xff]
      %45 = vadd.xlane.f32.xlu0 %v44
      %v46 = vpop.xlane.xlu0 %45
      %v47 = vlog2.pop %v46
      %v48 = vmul.f32 %v47, 0.6931472
      %v49 = vsub.f32 %v48, 5.5451775
      %v50 = vmul.f32 %v49, 0.33333334
      %v51 = vmul.f32 %v50, 1.442695
      %v52 = vpow.pop %v51
      %vm53 = vcmask 7168
      %54 = vst.msk [vmem:[%s2] sm:$0xff] %vm53, %v52
    $region21: #{tpu_custom_call.1} parent=1 // pred_fallthru
      _
    // Predicated region
    $region22: #{tpu_custom_call.1} parent=1 // pred_check
      _
    $region23: #{tpu_custom_call.1} parent=1 // pred_check_branch
      %56 = sbr.rel (0) target = $region25
    $region24: #{tpu_custom_call.1} parent=1 // pred_region
      _
    $region25: #{tpu_custom_call.1} parent=1 // pred_fallthru
      _
    // Predicated region
    $region26: #{tpu_custom_call.1} parent=1 // pred_check
      _
    $region27: #{tpu_custom_call.1} parent=1 // pred_check_branch
      %58 = sbr.rel (0) target = $region29
    $region28: #{tpu_custom_call.1} parent=1 // pred_region
      _
    $region29: #{tpu_custom_call.1} parent=1 // pred_fallthru
      _
    %59 = vsyncpa [#allocation5], 1

</llo_original>
